<compile_context>
chip_gen: v5e
topology: v5e:2x2
jax: 0.10.0
libtpu: 0.0.40
codegen_flags: <defaults>
</compile_context>

<pallas_src>
import functools

import jax
import jax.numpy as jnp
from jax.experimental import pallas as pl
from jax.experimental.pallas import tpu as pltpu


def _round_up(x: int, m: int) -> int:
    return ((x + m - 1) // m) * m


def _pick_tile(dim: int, cap: int, gran: int) -> int:
    """Largest multiple of `gran` <= cap that divides `dim` (dim is a multiple of gran)."""
    cap = max(gran, min(cap, dim))
    cap = (cap // gran) * gran
    for t in range(cap, gran - 1, -gran):
        if dim % t == 0:
            return t
    return gran


def _linear_kernel_f32(x_ref, wt_ref, b_ref, o_ref):
    """f32 output: accumulate straight into the K-resident output tile (no scratch).

    x_ref:  (tm, tk)  activation tile
    wt_ref: (tk, tn)  weight tile, already in (K, N) layout
    b_ref:  (1,  tn)  f32 bias tile
    o_ref:  (tm, tn)  f32 output tile (resident across the K axis)
    """
    k = pl.program_id(2)

    @pl.when(k == 0)
    def _():
        o_ref[...] = jnp.zeros_like(o_ref)

    o_ref[...] += jnp.dot(x_ref[...], wt_ref[...], preferred_element_type=jnp.float32)

    @pl.when(k == pl.num_programs(2) - 1)
    def _():
        o_ref[...] += b_ref[...]


def _linear_kernel_acc(x_ref, wt_ref, b_ref, o_ref, acc_ref):
    """Low-precision output: f32 VMEM accumulator, bias-add + cast on the last K step."""
    k = pl.program_id(2)

    @pl.when(k == 0)
    def _():
        acc_ref[...] = jnp.zeros_like(acc_ref)

    acc_ref[...] += jnp.dot(x_ref[...], wt_ref[...], preferred_element_type=jnp.float32)

    @pl.when(k == pl.num_programs(2) - 1)
    def _():
        o_ref[...] = (acc_ref[...] + b_ref[...]).astype(o_ref.dtype)


@functools.partial(jax.jit, static_argnames=("tm", "tn", "tk", "compute_dtype"))
def linear_forward(x, weight, bias, *, tm=None, tn=None, tk=None, compute_dtype=None):
    """x: [B, in_dim]; weight: [out_dim, in_dim] (PyTorch layout); bias: [out_dim]."""
    B, in_dim = x.shape
    out_dim = weight.shape[0]
    out_dtype = x.dtype

    # One-time NT -> NN layout change: [out, in] -> [in, out] so the kernel contracts the
    # leading dim of the weight tile (pure MXU, no per-K-tile XLU transpose).
    # TODO(synk): for inference, hoist this transpose (and optional bf16 cast) to weight-load time.
    wt = weight.T
    if compute_dtype is not None:
        x = x.astype(compute_dtype)
        wt = wt.astype(compute_dtype)

    x_bytes = jnp.dtype(x.dtype).itemsize
    w_bytes = jnp.dtype(wt.dtype).itemsize
    o_bytes = jnp.dtype(out_dtype).itemsize

    # ---- tile selection -------------------------------------------------------------
    gran_m = 16 if x_bytes < 4 else 8          # bf16 packs 2 rows / sublane
    tm_cap, tn_cap = 512, 512
    tk_cap = 2048 if max(x_bytes, w_bytes) < 4 else 1024

    Mp = _round_up(B, gran_m)
    Np = _round_up(out_dim, 128)
    Kp = _round_up(in_dim, 128)

    if tm is None:
        if Mp <= tm_cap:
            tm = Mp                             # grid_m == 1: weight streamed once per call
        else:
            tm = _pick_tile(Mp, tm_cap, gran_m)
            if tm < 128:                        # awkward divisor -> pad M instead of tiny tiles
                tm = tm_cap
                Mp = _round_up(B, tm)
    else:
        Mp = _round_up(B, tm)

    if tn is None:
        tn_eff_cap = tn_cap
        if Mp == tm and Np >= 256:
            # Single M block: keep >= 2 N blocks so both v7x TensorCores get work.
            tn_eff_cap = min(tn_cap, Np // 2)
        tn = _pick_tile(Np, tn_eff_cap, 128)
    else:
        Np = _round_up(out_dim, tn)

    if tk is None:
        tk = _pick_tile(Kp, tk_cap, 128)
    else:
        Kp = _round_up(in_dim, tk)

    # ---- pad ragged edges (zero K-padding contributes nothing to the reduction) ------
    xp = x if (Mp == B and Kp == in_dim) else jnp.pad(x, ((0, Mp - B), (0, Kp - in_dim)))
    wtp = (wt if (Kp == in_dim and Np == out_dim)
           else jnp.pad(wt, ((0, Kp - in_dim), (0, Np - out_dim))))
    bp = bias.astype(jnp.float32)
    bp = bp if Np == out_dim else jnp.pad(bp, (0, Np - out_dim))
    b2d = bp.reshape(1, Np)

    grid = (Mp // tm, Np // tn, Kp // tk)

    use_scratch = out_dtype != jnp.float32
    kernel = _linear_kernel_acc if use_scratch else _linear_kernel_f32
    scratch_shapes = [pltpu.VMEM((tm, tn), jnp.float32)] if use_scratch else []

    # Double-buffered inputs + double-buffered output (+ optional f32 scratch).
    footprint = (2 * (tm * tk * x_bytes + tk * tn * w_bytes + tn * 4)
                 + 2 * tm * tn * o_bytes
                 + (tm * tn * 4 if use_scratch else 0))
    vmem_limit = int(min(48 << 20, max(32 << 20, footprint + (8 << 20))))

    cost = pl.CostEstimate(
        flops=2 * Mp * Np * Kp,
        transcendentals=0,
        bytes_accessed=(Mp * Kp * x_bytes * (Np // tn)      # x re-read once per N block
                        + Kp * Np * w_bytes * (Mp // tm)    # W re-read once per M block
                        + Mp * Np * o_bytes),               # output written once
    )

    out = pl.pallas_call(
        kernel,
        out_shape=jax.ShapeDtypeStruct((Mp, Np), out_dtype),
        grid_spec=pl.GridSpec(
            grid=grid,
            in_specs=[
                pl.BlockSpec((tm, tk), lambda i, j, k: (i, k)),   # x
                pl.BlockSpec((tk, tn), lambda i, j, k: (k, j)),   # W^T, (K, N) layout
                pl.BlockSpec((1, tn), lambda i, j, k: (0, j)),    # bias
            ],
            out_specs=pl.BlockSpec((tm, tn), lambda i, j, k: (i, j)),
            scratch_shapes=scratch_shapes,
        ),
        compiler_params=pltpu.CompilerParams(
            dimension_semantics=("parallel", "parallel", "arbitrary"),
            vmem_limit_bytes=vmem_limit,
        ),
        cost_estimate=cost,
    )(xp, wtp, b2d)

    if Mp != B or Np != out_dim:
        out = out[:B, :out_dim]
    return out


if __name__ == "__main__":
    # Small shapes consistent with nn.Linear(in_dim, out_dim) that still exercise
    # ragged-edge padding, the small-batch single-M-block path, the multi-tile (M,N,K)
    # reduction path, and the bf16 scratch-accumulator path.
    batch, in_dim, out_dim = 24, 320, 192

    key = jax.random.PRNGKey(0)
    kx, kw, kb = jax.random.split(key, 3)

    x = jax.random.normal(kx, (batch, in_dim), dtype=jnp.float32)
    bound = 1.0 / (in_dim ** 0.5)      # nn.Linear's default uniform(-1/sqrt(in), 1/sqrt(in))
    weight = jax.random.uniform(kw, (out_dim, in_dim), jnp.float32, -bound, bound)
    bias = jax.random.uniform(kb, (out_dim,), jnp.float32, -bound, bound)

    y_ref = x @ weight.T + bias

    # 1) Auto-tiled f32 path (grid_m == 1, >=2 N blocks, direct f32 output accumulation).
    y = jax.block_until_ready(linear_forward(x, weight, bias))
    assert y.shape == (batch, out_dim)
    assert jnp.allclose(y, y_ref, atol=1e-4, rtol=1e-4), float(jnp.max(jnp.abs(y - y_ref)))

    # 2) Small explicit tiles to genuinely exercise the (3, 2, 3) grid and K reduction.
    y2 = jax.block_until_ready(linear_forward(x, weight, bias, tm=8, tn=128, tk=128))
    assert jnp.allclose(y2, y_ref, atol=1e-4, rtol=1e-4), float(jnp.max(jnp.abs(y2 - y_ref)))

    # 3) bf16 inputs/output: exercises the f32-scratch accumulator kernel (looser tolerance).
    y3 = jax.block_until_ready(
        linear_forward(x.astype(jnp.bfloat16),
                       weight.astype(jnp.bfloat16),
                       bias.astype(jnp.bfloat16)))
    assert y3.dtype == jnp.bfloat16
    y3f = y3.astype(jnp.float32)
    assert jnp.allclose(y3f, y_ref, atol=6e-2, rtol=6e-2), float(jnp.max(jnp.abs(y3f - y_ref)))

    print("KERNEL_OK")
</pallas_src>

<mosaic_0001>
module attributes {stable_mosaic.version = 11 : i64} {
  func.func @_linear_kernel_f32(%arg0: i32, %arg1: i32, %arg2: i32, %arg3: memref<24x384xf32, #tpu.memory_space<vmem>>, %arg4: memref<384x128xf32, #tpu.memory_space<vmem>>, %arg5: memref<1x128xf32, #tpu.memory_space<vmem>>, %arg6: memref<24x128xf32, #tpu.memory_space<vmem>>) attributes {dimension_semantics = [#tpu.dimension_semantics<parallel>, #tpu.dimension_semantics<parallel>, #tpu.dimension_semantics<arbitrary>], iteration_bounds = array<i64: 1, 2, 1>, scalar_prefetch = 0 : i64, scratch_operands = 0 : i64, tpu.core_type = #tpu.core_type<tc>, window_params = [{transform_indices = @transform_0, window_bounds = array<i64: 24, 384>}, {transform_indices = @transform_1, window_bounds = array<i64: 384, 128>}, {transform_indices = @transform_2, window_bounds = array<i64: 1, 128>}, {transform_indices = @transform_3, window_bounds = array<i64: 24, 128>}]} {
    %c0_i32 = arith.constant 0 : i32
    %0 = arith.cmpi eq, %arg2, %c0_i32 : i32
    %1 = arith.extui %0 : i1 to i32
    %c0_i32_0 = arith.constant 0 : i32
    %2 = arith.cmpi ne, %1, %c0_i32_0 : i32
    scf.if %2 {
      %cst_10 = arith.constant 0.000000e+00 : f32
      %12 = vector.broadcast %cst_10 : f32 to vector<24x128xf32>
      %c0_11 = arith.constant 0 : index
      %c0_12 = arith.constant 0 : index
      %13 = vector.load %arg6[%c0_11, %c0_12] : memref<24x128xf32, #tpu.memory_space<vmem>>, vector<24x128xf32>
      tpu.vector_store %arg6[%c0_11, %c0_12], %12 {strides = array<i32>} : memref<24x128xf32, #tpu.memory_space<vmem>>, vector<24x128xf32>,
    } else {
    }
    %c0 = arith.constant 0 : index
    %c0_1 = arith.constant 0 : index
    %3 = vector.load %arg6[%c0, %c0_1] : memref<24x128xf32, #tpu.memory_space<vmem>>, vector<24x128xf32>
    %c0_2 = arith.constant 0 : index
    %c0_3 = arith.constant 0 : index
    %4 = vector.load %arg3[%c0_2, %c0_3] : memref<24x384xf32, #tpu.memory_space<vmem>>, vector<24x384xf32>
    %c0_4 = arith.constant 0 : index
    %c0_5 = arith.constant 0 : index
    %5 = vector.load %arg4[%c0_4, %c0_5] : memref<384x128xf32, #tpu.memory_space<vmem>>, vector<384x128xf32>
    %cst = arith.constant dense<0.000000e+00> : vector<24x128xf32>
    %6 = tpu.matmul %4, %5, %cst {dimension_numbers = #tpu.dot_dimension_numbers<[1], [0], [0], [1], [0, 0, 1, 1], [], []>} : vector<24x384xf32>, vector<384x128xf32>, vector<24x128xf32> -> vector<24x128xf32>
    %7 = arith.addf %3, %6 : vector<24x128xf32>
    %c0_6 = arith.constant 0 : index
    %c0_7 = arith.constant 0 : index
    %8 = vector.load %arg6[%c0_6, %c0_7] : memref<24x128xf32, #tpu.memory_space<vmem>>, vector<24x128xf32>
    tpu.vector_store %arg6[%c0_6, %c0_7], %7 {strides = array<i32>} : memref<24x128xf32, #tpu.memory_space<vmem>>, vector<24x128xf32>,
    %c0_i32_8 = arith.constant 0 : i32
    %9 = arith.cmpi eq, %arg2, %c0_i32_8 : i32
    %10 = arith.extui %9 : i1 to i32
    %c0_i32_9 = arith.constant 0 : i32
    %11 = arith.cmpi ne, %10, %c0_i32_9 : i32
    scf.if %11 {
      %c0_10 = arith.constant 0 : index
      %c0_11 = arith.constant 0 : index
      %12 = vector.load %arg6[%c0_10, %c0_11] : memref<24x128xf32, #tpu.memory_space<vmem>>, vector<24x128xf32>
      %c0_12 = arith.constant 0 : index
      %c0_13 = arith.constant 0 : index
      %13 = vector.load %arg5[%c0_12, %c0_13] : memref<1x128xf32, #tpu.memory_space<vmem>>, vector<1x128xf32>
      %14 = vector.broadcast %13 : vector<1x128xf32> to vector<24x128xf32>
      %15 = arith.addf %12, %14 : vector<24x128xf32>
      %c0_14 = arith.constant 0 : index
      %c0_15 = arith.constant 0 : index
      %16 = vector.load %arg6[%c0_14, %c0_15] : memref<24x128xf32, #tpu.memory_space<vmem>>, vector<24x128xf32>
      tpu.vector_store %arg6[%c0_14, %c0_15], %15 {strides = array<i32>} : memref<24x128xf32, #tpu.memory_space<vmem>>, vector<24x128xf32>,
    } else {
    }
    return
  }
  func.func @transform_0(%arg0: i32, %arg1: i32, %arg2: i32) -> (i32, i32) {
    %c0_i32 = arith.constant 0 : i32
    return %arg0, %arg2 : i32, i32
  }
  func.func @transform_1(%arg0: i32, %arg1: i32, %arg2: i32) -> (i32, i32) {
    %c0_i32 = arith.constant 0 : i32
    return %arg2, %arg1 : i32, i32
  }
  func.func @transform_2(%arg0: i32, %arg1: i32, %arg2: i32) -> (i32, i32) {
    %c0_i32 = arith.constant 0 : i32
    %c0_i32_0 = arith.constant 0 : i32
    return %c0_i32, %arg1 : i32, i32
  }
  func.func @transform_3(%arg0: i32, %arg1: i32, %arg2: i32) -> (i32, i32) {
    %c0_i32 = arith.constant 0 : i32
    return %arg0, %arg1 : i32, i32
  }
}

</mosaic_0001>

<llo_original>
// kernel: linear_forward.1
$region0: #{linear_forward.1}
  #allocation0 [shape = 'u32[]', space=smem, size = 0x4, offset = 0x4, fixed_abs, tag = 'smem constant byte address 0x4 - core index']
  #allocation1 [shape = 'u32[72,128]{1,0:T(1,128)}', space=vmem, size = 0x9000, scoped, tag = 'internal scratch']
  %s0 = inlined_call_operand.vmem [shape: f32[24,384], index: 0, kind: input, shape index: {}]
  %s1 = inlined_call_operand.vmem [shape: f32[384,256], index: 1, kind: input, shape index: {}]
  %s2 = inlined_call_operand.vmem [shape: f32[1,256], index: 2, kind: input, shape index: {}]
  %s3 = inlined_call_operand.hbm [shape: f32[24,256], index: 3, kind: output, shape index: {}]
  %s4 = sld [smem:[#allocation0]]
  $region91: #{linear_forward.1} parent=0
    _
  %s6 = ssub.s32 1, %s4
  %s7 = scalar_select 0, %s6, %s4
  $region1: #{linear_forward.1} parent=0
    #allocation2 [shape = 'u8[393216]{0}', space=vmem, size = 0x60000, scoped, tag = 'input window, operand 1']
    #allocation3 [shape = 'u8[24576]{0}', space=vmem, size = 0x6000, scoped, tag = 'output window, operand 0']
    #allocation4 [shape = 's32[2]{0}', space=sflag, size = 0x8, scoped, tag = 'scoped memory for linear_forward.1']
    %8 = vsyncpa [#allocation4], 0
    %s9 = scalar_lea.sflag [#allocation4], 1
    %10 = vsyncpa %s9, 0
    loop: start=0, step=1, limit=4
    $region2: #{linear_forward.1} parent=1 // loop_pre_header
      _
    $region3: #{linear_forward.1} parent=1 // loop_header
      %s12 = sphi 0, %s16
      %p13 = scmp.ge.s32.totalorder %s12, 4
      %s19 = sphi 0, %s38
      %s20 = sphi 0, %s34
      %s21 = sphi 0, %s30
      %s22 = sphi 0, %s19
      %s23 = sphi 0, %s20
      %s24 = sphi 0, %s21
      %s25 = sphi 0, %s22
      %s26 = sphi 0, %s23
      %s27 = sphi 0, %s24
      %s43 = sphi 0, %s45
      %s46 = sphi 0, %s43
      %s47 = sphi 0, %s46
      %s63 = sphi 0, %s47
      %s71 = sphi 0, %s73
      %s74 = sphi 0, %s71
      %s75 = sphi 0, %s74
      %s91 = sphi 0, %s75
      %s97 = sphi 0, %s99
      %s100 = sphi 0, %s97
      %s101 = sphi 0, %s100
      %s117 = sphi 0, %s101
      %s125 = sphi 0, %s127
      %s128 = sphi 0, %s125
      %s129 = sphi 0, %s128
      %s145 = sphi 0, %s129
    $region4: #{linear_forward.1} parent=1 // loop_header_branch
      %15 = sbr.rel (%p13) target = $region8
    $region5: #{linear_forward.1} parent=1 // loop_body
      %s17 = ssub.s32 %s12, 1
      %s18 = ssub.s32 %s12, 2
      %s28 = sadd.s32 1, %s21
      %p29 = scmp.ge.s32.totalorder %s28, 1
      %s30 = scalar_select %p29, 0, %s28
      %s31 = sadd.s32 1, %s20
      %s32 = scalar_select %p29, %s31, %s20
      %p33 = scmp.ge.s32.totalorder %s32, 2
      %s34 = scalar_select %p33, 0, %s32
      %s35 = sadd.s32 1, %s19
      %s36 = scalar_select %p33, %s35, %s19
      %p37 = scmp.ge.s32.totalorder %s36, 1
      %s38 = scalar_select %p37, 0, %s36
      %s39 = ssub.s32 %s19, %s38
      %s40 = ssub.s32 %s21, %s30
      %s41 = sor.u32 %s39, %s40
      %p42 = scmp.eq.s32.totalorder %s41, 0
      %s44 = sadd.s32 %s43, 1
      %s45 = scalar_select %p42, %s43, %s44
      %p48 = pneg %p42
      %p49 = scmp.eq.s32.totalorder %s12, 1
      %p50 = por %p48, %p49
      %p51 = scmp.ne.s32.totalorder %s43, %s46
      %p52 = scmp.eq.s32.totalorder %s12, 0
      %p53 = por %p51, %p52
      %p54 = scmp.ne.s32.totalorder %s43, %s46
      %p55 = scmp.eq.s32.totalorder %s17, 1
      %p56 = por %p54, %p55
      %p57 = scmp.ne.s32.totalorder %s46, %s47
      %p58 = scmp.eq.s32.totalorder %s17, 0
      %p59 = por %p57, %p58
      %p60 = scmp.ne.s32.totalorder %s46, %s47
      %p61 = scmp.eq.s32.totalorder %s18, 1
      %p62 = por %p60, %p61
      %p64 = scmp.ne.s32.totalorder %s47, %s63
      %p65 = scmp.eq.s32.totalorder %s18, 0
      %p66 = por %p64, %p65
      %s67 = ssub.s32 %s21, %s30
      %s68 = ssub.s32 %s20, %s34
      %s69 = sor.u32 %s67, %s68
      %p70 = scmp.eq.s32.totalorder %s69, 0
      %s72 = sadd.s32 %s71, 1
      %s73 = scalar_select %p70, %s71, %s72
      %p76 = pneg %p70
      %p77 = scmp.eq.s32.totalorder %s12, 1
      %p78 = por %p76, %p77
      %p79 = scmp.ne.s32.totalorder %s71, %s74
      %p80 = scmp.eq.s32.totalorder %s12, 0
      %p81 = por %p79, %p80
      %p82 = scmp.ne.s32.totalorder %s71, %s74
      %p83 = scmp.eq.s32.totalorder %s17, 1
      %p84 = por %p82, %p83
      %p85 = scmp.ne.s32.totalorder %s74, %s75
      %p86 = scmp.eq.s32.totalorder %s17, 0
      %p87 = por %p85, %p86
      %p88 = scmp.ne.s32.totalorder %s74, %s75
      %p89 = scmp.eq.s32.totalorder %s18, 1
      %p90 = por %p88, %p89
      %p92 = scmp.ne.s32.totalorder %s75, %s91
      %p93 = scmp.eq.s32.totalorder %s18, 0
      %p94 = por %p92, %p93
      %s95 = ssub.s32 %s20, %s34
      %p96 = scmp.eq.s32.totalorder %s95, 0
      %s98 = sadd.s32 %s97, 1
      %s99 = scalar_select %p96, %s97, %s98
      %p102 = pneg %p96
      %p103 = scmp.eq.s32.totalorder %s12, 1
      %p104 = por %p102, %p103
      %p105 = scmp.ne.s32.totalorder %s97, %s100
      %p106 = scmp.eq.s32.totalorder %s12, 0
      %p107 = por %p105, %p106
      %p108 = scmp.ne.s32.totalorder %s97, %s100
      %p109 = scmp.eq.s32.totalorder %s17, 1
      %p110 = por %p108, %p109
      %p111 = scmp.ne.s32.totalorder %s100, %s101
      %p112 = scmp.eq.s32.totalorder %s17, 0
      %p113 = por %p111, %p112
      %p114 = scmp.ne.s32.totalorder %s100, %s101
      %p115 = scmp.eq.s32.totalorder %s18, 1
      %p116 = por %p114, %p115
      %p118 = scmp.ne.s32.totalorder %s101, %s117
      %p119 = scmp.eq.s32.totalorder %s18, 0
      %p120 = por %p118, %p119
      %s121 = ssub.s32 %s19, %s38
      %s122 = ssub.s32 %s20, %s34
      %s123 = sor.u32 %s121, %s122
      %p124 = scmp.eq.s32.totalorder %s123, 0
      %s126 = sadd.s32 %s125, 1
      %s127 = scalar_select %p124, %s125, %s126
      %p130 = pneg %p124
      %p131 = scmp.eq.s32.totalorder %s12, 1
      %p132 = por %p130, %p131
      %p133 = scmp.ne.s32.totalorder %s125, %s128
      %p134 = scmp.eq.s32.totalorder %s12, 0
      %p135 = por %p133, %p134
      %p136 = scmp.ne.s32.totalorder %s125, %s128
      %p137 = scmp.eq.s32.totalorder %s17, 1
      %p138 = por %p136, %p137
      %p139 = scmp.ne.s32.totalorder %s128, %s129
      %p140 = scmp.eq.s32.totalorder %s17, 0
      %p141 = por %p139, %p140
      %p142 = scmp.ne.s32.totalorder %s128, %s129
      %p143 = scmp.eq.s32.totalorder %s18, 1
      %p144 = por %p142, %p143
      %p146 = scmp.ne.s32.totalorder %s129, %s145
      %p147 = scmp.eq.s32.totalorder %s18, 0
      %p148 = por %p146, %p147
      %p149 = scmp.le.s32.totalorder 1, %s12
      %p150 = scmp.lt.s32.totalorder %s12, 3
      %p151 = pnand %p149, %p150
      %p152 = pneg %p151
      // Predicated region
      $region9: #{linear_forward.1} parent=5 // pred_check
        _
      $region10: #{linear_forward.1} parent=5 // pred_check_branch
        %154 = sbr.rel (%p151) target = $region12
      $region11: #{linear_forward.1} parent=5 // pred_region
        %s155 = ssub.s32 %s12, 1
        // Predicated region
        $region13: #{linear_forward.1} parent=11 // pred_check
          %p156 = pneg %p59
        $region14: #{linear_forward.1} parent=11 // pred_check_branch
          %158 = sbr.rel (%p156) target = $region16
        $region15: #{linear_forward.1} parent=11 // pred_region
          %s159 = smul.u32 3, %s22
          %s160 = smul.u32 3, %s24
          %p161 = scmp.lt.s32.totalorder %s159, 2
          %s162 = scalar_select %p161, %s159, 2
          %p163 = scmp.lt.s32.totalorder %s160, 2
          %s164 = scalar_select %p163, %s160, 2
          %s165 = smul.addr %s162, 3
          %s166 = sadd.s32 %s164, %s165
          %s167 = smul.addr %s166, 8
          %s168 = scalar_lea.vmem %s0, %s167
          %s169 = smul.u32 3, %s22
          %s170 = smul.u32 3, %s24
        $region16: #{linear_forward.1} parent=11 // pred_fallthru
          _
      $region12: #{linear_forward.1} parent=5 // pred_fallthru
        _
      %p171 = scmp.lt.s32.totalorder %s12, 2
      // Predicated region
      $region17: #{linear_forward.1} parent=5 // pred_check
        %p172 = pneg %p171
      $region18: #{linear_forward.1} parent=5 // pred_check_branch
        %174 = sbr.rel (%p172) target = $region20
      $region19: #{linear_forward.1} parent=5 // pred_region
        // Predicated region
        $region21: #{linear_forward.1} parent=19 // pred_check
          %p175 = pneg %p81
        $region22: #{linear_forward.1} parent=19 // pred_check_branch
          %177 = sbr.rel (%p175) target = $region24
        $region23: #{linear_forward.1} parent=19 // pred_region
          %s178 = sand.u32 %s71, 1
          %s179 = sand.u32 %s71, 1
          %s180 = smul.addr %s179, 384
          %s181 = scalar_lea.vmem [#allocation2], %s180
          %s182 = smul.u32 48, %s21
          %s183 = smul.addr %s182, 2
          %s184 = sadd.s32 %s20, %s183
          %s185 = smul.addr %s184, 8
          %s186 = scalar_lea.vmem %s1, %s185
          // Predicated region
          $region25: #{linear_forward.1} parent=23 // pred_check
            _
          $region26: #{linear_forward.1} parent=23 // pred_check_branch
            %188 = sbr.rel (0) target = $region28
          $region27: #{linear_forward.1} parent=23 // pred_region
            // Predicated region
            $region29: #{linear_forward.1} parent=27 // pred_check
              _
            $region30: #{linear_forward.1} parent=27 // pred_check_branch
              %190 = sbr.rel (0) target = $region32
            $region31: #{linear_forward.1} parent=27 // pred_region
              // Predicated region
              $region44: #{linear_forward.1} parent=31 // pred_check
                _
              $region45: #{linear_forward.1} parent=31 // pred_check_branch
                %300 = sbr.rel (0) target = $region47
              $region46: #{linear_forward.1} parent=31 // pred_region
                loop: start=0, step=1, limit=1
                $region48: #{linear_forward.1} parent=46 // loop_pre_header
                  _
                $region49: #{linear_forward.1} parent=46 // loop_header
                  %s302 = sphi 0, %s306
                  %p303 = scmp.ge.s32.totalorder %s302, 1
                  %s307 = sphi %s186, %s186
                  %s308 = sphi %s181, %s181
                $region50: #{linear_forward.1} parent=46 // loop_header_branch
                  %305 = sbr.rel (%p303) target = $region54
                $region51: #{linear_forward.1} parent=46 // loop_body
                  %v309 = vld [vmem:[%s307] sm:$0xff]
                  %310 = vst [vmem:[%s308] sm:$0xff] %v309
                  %v311 = vld [vmem:[%s307 + $0x10] sm:$0xff]
                  %312 = vst [vmem:[%s308 + $0x8] sm:$0xff] %v311
                  %v313 = vld [vmem:[%s307 + $0x20] sm:$0xff]
                  %314 = vst [vmem:[%s308 + $0x10] sm:$0xff] %v313
                  %v315 = vld [vmem:[%s307 + $0x30] sm:$0xff]
                  %316 = vst [vmem:[%s308 + $0x18] sm:$0xff] %v315
                  %v317 = vld [vmem:[%s307 + $0x40] sm:$0xff]
                  %318 = vst [vmem:[%s308 + $0x20] sm:$0xff] %v317
                  %v319 = vld [vmem:[%s307 + $0x50] sm:$0xff]
                  %320 = vst [vmem:[%s308 + $0x28] sm:$0xff] %v319
                  %v321 = vld [vmem:[%s307 + $0x60] sm:$0xff]
                  %322 = vst [vmem:[%s308 + $0x30] sm:$0xff] %v321
                  %v323 = vld [vmem:[%s307 + $0x70] sm:$0xff]
                  %324 = vst [vmem:[%s308 + $0x38] sm:$0xff] %v323
                  %v325 = vld [vmem:[%s307 + $0x80] sm:$0xff]
                  %326 = vst [vmem:[%s308 + $0x40] sm:$0xff] %v325
                  %v327 = vld [vmem:[%s307 + $0x90] sm:$0xff]
                  %328 = vst [vmem:[%s308 + $0x48] sm:$0xff] %v327
                  %v329 = vld [vmem:[%s307 + $0xa0] sm:$0xff]
                  %330 = vst [vmem:[%s308 + $0x50] sm:$0xff] %v329
                  %v331 = vld [vmem:[%s307 + $0xb0] sm:$0xff]
                  %332 = vst [vmem:[%s308 + $0x58] sm:$0xff] %v331
                  %v333 = vld [vmem:[%s307 + $0xc0] sm:$0xff]
                  %334 = vst [vmem:[%s308 + $0x60] sm:$0xff] %v333
                  %v335 = vld [vmem:[%s307 + $0xd0] sm:$0xff]
                  %336 = vst [vmem:[%s308 + $0x68] sm:$0xff] %v335
                  %v337 = vld [vmem:[%s307 + $0xe0] sm:$0xff]
                  %338 = vst [vmem:[%s308 + $0x70] sm:$0xff] %v337
                  %v339 = vld [vmem:[%s307 + $0xf0] sm:$0xff]
                  %340 = vst [vmem:[%s308 + $0x78] sm:$0xff] %v339
                  %v341 = vld [vmem:[%s307 + $0x100] sm:$0xff]
                  %342 = vst [vmem:[%s308 + $0x80] sm:$0xff] %v341
                  %v343 = vld [vmem:[%s307 + $0x110] sm:$0xff]
                  %344 = vst [vmem:[%s308 + $0x88] sm:$0xff] %v343
                  %v345 = vld [vmem:[%s307 + $0x120] sm:$0xff]
                  %346 = vst [vmem:[%s308 + $0x90] sm:$0xff] %v345
                  %v347 = vld [vmem:[%s307 + $0x130] sm:$0xff]
                  %348 = vst [vmem:[%s308 + $0x98] sm:$0xff] %v347
                  %v349 = vld [vmem:[%s307 + $0x140] sm:$0xff]
                  %350 = vst [vmem:[%s308 + $0xa0] sm:$0xff] %v349
                  %v351 = vld [vmem:[%s307 + $0x150] sm:$0xff]
                  %352 = vst [vmem:[%s308 + $0xa8] sm:$0xff] %v351
                  %v353 = vld [vmem:[%s307 + $0x160] sm:$0xff]
                  %354 = vst [vmem:[%s308 + $0xb0] sm:$0xff] %v353
                  %v355 = vld [vmem:[%s307 + $0x170] sm:$0xff]
                  %356 = vst [vmem:[%s308 + $0xb8] sm:$0xff] %v355
                  %v357 = vld [vmem:[%s307 + $0x180] sm:$0xff]
                  %358 = vst [vmem:[%s308 + $0xc0] sm:$0xff] %v357
                  %v359 = vld [vmem:[%s307 + $0x190] sm:$0xff]
                  %360 = vst [vmem:[%s308 + $0xc8] sm:$0xff] %v359
                  %v361 = vld [vmem:[%s307 + $0x1a0] sm:$0xff]
                  %362 = vst [vmem:[%s308 + $0xd0] sm:$0xff] %v361
                  %v363 = vld [vmem:[%s307 + $0x1b0] sm:$0xff]
                  %364 = vst [vmem:[%s308 + $0xd8] sm:$0xff] %v363
                  %v365 = vld [vmem:[%s307 + $0x1c0] sm:$0xff]
                  %366 = vst [vmem:[%s308 + $0xe0] sm:$0xff] %v365
                  %v367 = vld [vmem:[%s307 + $0x1d0] sm:$0xff]
                  %368 = vst [vmem:[%s308 + $0xe8] sm:$0xff] %v367
                  %v369 = vld [vmem:[%s307 + $0x1e0] sm:$0xff]
                  %370 = vst [vmem:[%s308 + $0xf0] sm:$0xff] %v369
                  %v371 = vld [vmem:[%s307 + $0x1f0] sm:$0xff]
                  %372 = vst [vmem:[%s308 + $0xf8] sm:$0xff] %v371
                  %v373 = vld [vmem:[%s307 + $0x200] sm:$0xff]
                  %374 = vst [vmem:[%s308 + $0x100] sm:$0xff] %v373
                  %v375 = vld [vmem:[%s307 + $0x210] sm:$0xff]
                  %376 = vst [vmem:[%s308 + $0x108] sm:$0xff] %v375
                  %v377 = vld [vmem:[%s307 + $0x220] sm:$0xff]
                  %378 = vst [vmem:[%s308 + $0x110] sm:$0xff] %v377
                  %v379 = vld [vmem:[%s307 + $0x230] sm:$0xff]
                  %380 = vst [vmem:[%s308 + $0x118] sm:$0xff] %v379
                  %v381 = vld [vmem:[%s307 + $0x240] sm:$0xff]
                  %382 = vst [vmem:[%s308 + $0x120] sm:$0xff] %v381
                  %v383 = vld [vmem:[%s307 + $0x250] sm:$0xff]
                  %384 = vst [vmem:[%s308 + $0x128] sm:$0xff] %v383
                  %v385 = vld [vmem:[%s307 + $0x260] sm:$0xff]
                  %386 = vst [vmem:[%s308 + $0x130] sm:$0xff] %v385
                  %v387 = vld [vmem:[%s307 + $0x270] sm:$0xff]
                  %388 = vst [vmem:[%s308 + $0x138] sm:$0xff] %v387
                  %v389 = vld [vmem:[%s307 + $0x280] sm:$0xff]
                  %390 = vst [vmem:[%s308 + $0x140] sm:$0xff] %v389
                  %v391 = vld [vmem:[%s307 + $0x290] sm:$0xff]
                  %392 = vst [vmem:[%s308 + $0x148] sm:$0xff] %v391
                  %v393 = vld [vmem:[%s307 + $0x2a0] sm:$0xff]
                  %394 = vst [vmem:[%s308 + $0x150] sm:$0xff] %v393
                  %v395 = vld [vmem:[%s307 + $0x2b0] sm:$0xff]
                  %396 = vst [vmem:[%s308 + $0x158] sm:$0xff] %v395
                  %v397 = vld [vmem:[%s307 + $0x2c0] sm:$0xff]
                  %398 = vst [vmem:[%s308 + $0x160] sm:$0xff] %v397
                  %v399 = vld [vmem:[%s307 + $0x2d0] sm:$0xff]
                  %400 = vst [vmem:[%s308 + $0x168] sm:$0xff] %v399
                  %v401 = vld [vmem:[%s307 + $0x2e0] sm:$0xff]
                  %402 = vst [vmem:[%s308 + $0x170] sm:$0xff] %v401
                  %v403 = vld [vmem:[%s307 + $0x2f0] sm:$0xff]
                  %404 = vst [vmem:[%s308 + $0x178] sm:$0xff] %v403
                $region52: #{linear_forward.1} parent=46 // loop_footer
                  %s306 = sadd.s32 1, %s302
                $region53: #{linear_forward.1} parent=46 // loop_footer_branch
                  %301 = sbr.rel target = $region49
                $region54: #{linear_forward.1} parent=46 // loop_exit
                  _
              $region47: #{linear_forward.1} parent=31 // pred_fallthru
                _
              // Predicated region
              $region55: #{linear_forward.1} parent=31 // pred_check
                _
              $region56: #{linear_forward.1} parent=31 // pred_check_branch
                %406 = sbr.rel target = $region58
              $region57: #{linear_forward.1} parent=31 // pred_region
                _
              $region58: #{linear_forward.1} parent=31 // pred_fallthru
                _
            $region32: #{linear_forward.1} parent=27 // pred_fallthru
              _
            // Predicated region
            $region33: #{linear_forward.1} parent=27 // pred_check
              _
            $region34: #{linear_forward.1} parent=27 // pred_check_branch
              %192 = sbr.rel target = $region36
            $region35: #{linear_forward.1} parent=27 // pred_region
              %s194 = ssub.s32 256, 1
              loop: start=0, step=1, limit=1
              $region37: #{linear_forward.1} parent=35 // loop_pre_header
                _
              $region38: #{linear_forward.1} parent=35 // loop_header
                %s196 = sphi 0, %s200
                %p197 = scmp.ge.s32.totalorder %s196, 1
                %s201 = sphi %s186, %s186
                %s202 = sphi %s181, %s181
              $region39: #{linear_forward.1} parent=35 // loop_header_branch
                %199 = sbr.rel (%p197) target = $region43
              $region40: #{linear_forward.1} parent=35 // loop_body
                %v203 = vld [vmem:[%s201] sm:%s194]
                %204 = vst [vmem:[%s202] sm:%s194] %v203
                %v205 = vld [vmem:[%s201 + $0x10] sm:%s194]
                %206 = vst [vmem:[%s202 + $0x8] sm:%s194] %v205
                %v207 = vld [vmem:[%s201 + $0x20] sm:%s194]
                %208 = vst [vmem:[%s202 + $0x10] sm:%s194] %v207
                %v209 = vld [vmem:[%s201 + $0x30] sm:%s194]
                %210 = vst [vmem:[%s202 + $0x18] sm:%s194] %v209
                %v211 = vld [vmem:[%s201 + $0x40] sm:%s194]
                %212 = vst [vmem:[%s202 + $0x20] sm:%s194] %v211
                %v213 = vld [vmem:[%s201 + $0x50] sm:%s194]
                %214 = vst [vmem:[%s202 + $0x28] sm:%s194] %v213
                %v215 = vld [vmem:[%s201 + $0x60] sm:%s194]
                %216 = vst [vmem:[%s202 + $0x30] sm:%s194] %v215
                %v217 = vld [vmem:[%s201 + $0x70] sm:%s194]
                %218 = vst [vmem:[%s202 + $0x38] sm:%s194] %v217
                %v219 = vld [vmem:[%s201 + $0x80] sm:%s194]
                %220 = vst [vmem:[%s202 + $0x40] sm:%s194] %v219
                %v221 = vld [vmem:[%s201 + $0x90] sm:%s194]
                %222 = vst [vmem:[%s202 + $0x48] sm:%s194] %v221
                %v223 = vld [vmem:[%s201 + $0xa0] sm:%s194]
                %224 = vst [vmem:[%s202 + $0x50] sm:%s194] %v223
                %v225 = vld [vmem:[%s201 + $0xb0] sm:%s194]
                %226 = vst [vmem:[%s202 + $0x58] sm:%s194] %v225
                %v227 = vld [vmem:[%s201 + $0xc0] sm:%s194]
                %228 = vst [vmem:[%s202 + $0x60] sm:%s194] %v227
                %v229 = vld [vmem:[%s201 + $0xd0] sm:%s194]
                %230 = vst [vmem:[%s202 + $0x68] sm:%s194] %v229
                %v231 = vld [vmem:[%s201 + $0xe0] sm:%s194]
                %232 = vst [vmem:[%s202 + $0x70] sm:%s194] %v231
                %v233 = vld [vmem:[%s201 + $0xf0] sm:%s194]
                %234 = vst [vmem:[%s202 + $0x78] sm:%s194] %v233
                %v235 = vld [vmem:[%s201 + $0x100] sm:%s194]
                %236 = vst [vmem:[%s202 + $0x80] sm:%s194] %v235
                %v237 = vld [vmem:[%s201 + $0x110] sm:%s194]
                %238 = vst [vmem:[%s202 + $0x88] sm:%s194] %v237
                %v239 = vld [vmem:[%s201 + $0x120] sm:%s194]
                %240 = vst [vmem:[%s202 + $0x90] sm:%s194] %v239
                %v241 = vld [vmem:[%s201 + $0x130] sm:%s194]
                %242 = vst [vmem:[%s202 + $0x98] sm:%s194] %v241
                %v243 = vld [vmem:[%s201 + $0x140] sm:%s194]
                %244 = vst [vmem:[%s202 + $0xa0] sm:%s194] %v243
                %v245 = vld [vmem:[%s201 + $0x150] sm:%s194]
                %246 = vst [vmem:[%s202 + $0xa8] sm:%s194] %v245
                %v247 = vld [vmem:[%s201 + $0x160] sm:%s194]
                %248 = vst [vmem:[%s202 + $0xb0] sm:%s194] %v247
                %v249 = vld [vmem:[%s201 + $0x170] sm:%s194]
                %250 = vst [vmem:[%s202 + $0xb8] sm:%s194] %v249
                %v251 = vld [vmem:[%s201 + $0x180] sm:%s194]
                %252 = vst [vmem:[%s202 + $0xc0] sm:%s194] %v251
                %v253 = vld [vmem:[%s201 + $0x190] sm:%s194]
                %254 = vst [vmem:[%s202 + $0xc8] sm:%s194] %v253
                %v255 = vld [vmem:[%s201 + $0x1a0] sm:%s194]
                %256 = vst [vmem:[%s202 + $0xd0] sm:%s194] %v255
                %v257 = vld [vmem:[%s201 + $0x1b0] sm:%s194]
                %258 = vst [vmem:[%s202 + $0xd8] sm:%s194] %v257
                %v259 = vld [vmem:[%s201 + $0x1c0] sm:%s194]
                %260 = vst [vmem:[%s202 + $0xe0] sm:%s194] %v259
                %v261 = vld [vmem:[%s201 + $0x1d0] sm:%s194]
                %262 = vst [vmem:[%s202 + $0xe8] sm:%s194] %v261
                %v263 = vld [vmem:[%s201 + $0x1e0] sm:%s194]
                %264 = vst [vmem:[%s202 + $0xf0] sm:%s194] %v263
                %v265 = vld [vmem:[%s201 + $0x1f0] sm:%s194]
                %266 = vst [vmem:[%s202 + $0xf8] sm:%s194] %v265
                %v267 = vld [vmem:[%s201 + $0x200] sm:%s194]
                %268 = vst [vmem:[%s202 + $0x100] sm:%s194] %v267
                %v269 = vld [vmem:[%s201 + $0x210] sm:%s194]
                %270 = vst [vmem:[%s202 + $0x108] sm:%s194] %v269
                %v271 = vld [vmem:[%s201 + $0x220] sm:%s194]
                %272 = vst [vmem:[%s202 + $0x110] sm:%s194] %v271
                %v273 = vld [vmem:[%s201 + $0x230] sm:%s194]
                %274 = vst [vmem:[%s202 + $0x118] sm:%s194] %v273
                %v275 = vld [vmem:[%s201 + $0x240] sm:%s194]
                %276 = vst [vmem:[%s202 + $0x120] sm:%s194] %v275
                %v277 = vld [vmem:[%s201 + $0x250] sm:%s194]
                %278 = vst [vmem:[%s202 + $0x128] sm:%s194] %v277
                %v279 = vld [vmem:[%s201 + $0x260] sm:%s194]
                %280 = vst [vmem:[%s202 + $0x130] sm:%s194] %v279
                %v281 = vld [vmem:[%s201 + $0x270] sm:%s194]
                %282 = vst [vmem:[%s202 + $0x138] sm:%s194] %v281
                %v283 = vld [vmem:[%s201 + $0x280] sm:%s194]
                %284 = vst [vmem:[%s202 + $0x140] sm:%s194] %v283
                %v285 = vld [vmem:[%s201 + $0x290] sm:%s194]
                %286 = vst [vmem:[%s202 + $0x148] sm:%s194] %v285
                %v287 = vld [vmem:[%s201 + $0x2a0] sm:%s194]
                %288 = vst [vmem:[%s202 + $0x150] sm:%s194] %v287
                %v289 = vld [vmem:[%s201 + $0x2b0] sm:%s194]
                %290 = vst [vmem:[%s202 + $0x158] sm:%s194] %v289
                %v291 = vld [vmem:[%s201 + $0x2c0] sm:%s194]
                %292 = vst [vmem:[%s202 + $0x160] sm:%s194] %v291
                %v293 = vld [vmem:[%s201 + $0x2d0] sm:%s194]
                %294 = vst [vmem:[%s202 + $0x168] sm:%s194] %v293
                %v295 = vld [vmem:[%s201 + $0x2e0] sm:%s194]
                %296 = vst [vmem:[%s202 + $0x170] sm:%s194] %v295
                %v297 = vld [vmem:[%s201 + $0x2f0] sm:%s194]
                %298 = vst [vmem:[%s202 + $0x178] sm:%s194] %v297
              $region41: #{linear_forward.1} parent=35 // loop_footer
                %s200 = sadd.s32 1, %s196
              $region42: #{linear_forward.1} parent=35 // loop_footer_branch
                %195 = sbr.rel target = $region38
              $region43: #{linear_forward.1} parent=35 // loop_exit
                _
            $region36: #{linear_forward.1} parent=27 // pred_fallthru
              _
          $region28: #{linear_forward.1} parent=23 // pred_fallthru
            _
          %407 = vnop
        $region24: #{linear_forward.1} parent=19 // pred_fallthru
          _
        // Predicated region
        $region59: #{linear_forward.1} parent=19 // pred_check
          %p408 = pneg %p107
        $region60: #{linear_forward.1} parent=19 // pred_check_branch
          %410 = sbr.rel (%p408) target = $region62
        $region61: #{linear_forward.1} parent=19 // pred_region
          %p411 = scmp.lt.s32.totalorder %s20, 1
          %s412 = scalar_select %p411, %s20, 1
          %s413 = scalar_lea.vmem %s2, %s412
        $region62: #{linear_forward.1} parent=19 // pred_fallthru
          _
      $region20: #{linear_forward.1} parent=5 // pred_fallthru
        _
      %p414 = scmp.le.s32.totalorder 1, %s12
      %p415 = scmp.lt.s32.totalorder %s12, 3
      %p416 = pnand %p414, %p415
      %p417 = pneg %p416
      // Predicated region
      $region63: #{linear_forward.1} parent=5 // pred_check
        _
      $region64: #{linear_forward.1} parent=5 // pred_check_branch
        %419 = sbr.rel (%p416) target = $region66
      $region65: #{linear_forward.1} parent=5 // pred_region
        %s420 = ssub.s32 %s12, 1
        %s421 = sand.u32 %s74, 1
        %s422 = sand.u32 %s74, 1
        %s423 = smul.addr %s422, 384
        %s424 = scalar_lea.vmem [#allocation2], %s423
        // Predicated region
        $region67: #{linear_forward.1} parent=65 // pred_check
          %p425 = pneg %p87
        $region68: #{linear_forward.1} parent=65 // pred_check_branch
          %427 = sbr.rel (%p425) target = $region70
        $region69: #{linear_forward.1} parent=65 // pred_region
          _
        $region70: #{linear_forward.1} parent=65 // pred_fallthru
          _
        %s428 = smul.u32 3, %s22
        %s429 = smul.u32 3, %s24
        %p430 = scmp.lt.s32.totalorder %s428, 2
        %s431 = scalar_select %p430, %s428, 2
        %p432 = scmp.lt.s32.totalorder %s429, 2
        %s433 = scalar_select %p432, %s429, 2
        %s434 = smul.addr %s431, 3
        %s435 = sadd.s32 %s433, %s434
        %s436 = smul.addr %s435, 8
        %s437 = scalar_lea.vmem %s0, %s436
        %p438 = pneg %p59
        %p439 = pneg %p56
        %s440 = sand.u32 %s74, 1
        %s441 = sand.u32 %s74, 1
        %s442 = smul.addr %s441, 384
        %s443 = scalar_lea.vmem [#allocation2], %s442
        %p444 = pneg %p87
        %p445 = pneg %p84
        %p446 = scmp.lt.s32.totalorder %s23, 1
        %s447 = scalar_select %p446, %s23, 1
        %s448 = scalar_lea.vmem %s2, %s447
        %p449 = pneg %p113
        %p450 = pneg %p110
        %p451 = pneg %p141
        %p452 = pneg %p138
        %s453 = sand.u32 %s128, 1
        %s454 = scalar_lea.sflag [#allocation4], %s453
        %s455 = sand.u32 %s128, 1
        %s456 = smul.addr %s455, 24
        %s457 = scalar_lea.vmem [#allocation3], %s456
        %s458 = smul.u32 3, %s22
        %s459 = smul.u32 3, %s24
        %p460 = scmp.lt.s32.totalorder %s458, 2
        %s461 = scalar_select %p460, %s458, 2
        %p462 = scmp.lt.s32.totalorder %s459, 2
        %s463 = scalar_select %p462, %s459, 2
        %s464 = smul.addr %s461, 3
        %s465 = sadd.s32 %s463, %s464
        %s466 = smul.addr %s465, 8
        %s467 = scalar_lea.vmem %s0, %s466
        %s468 = smul.u32 3, %s22
        %s469 = smul.u32 3, %s24
        %s470 = smul.u32 48, %s24
        %p471 = scmp.lt.s32.totalorder %s23, 1
        %s472 = scalar_select %p471, %s23, 1
        %s473 = scalar_lea.vmem %s2, %s472
        %s474 = smul.u32 3, %s22
        %p475 = scmp.eq.s32.totalorder %s24, 0
        // Predicated region
        $region71: #{linear_forward.1} parent=65 // pred_check
          %p476 = pneg %p475
        $region72: #{linear_forward.1} parent=65 // pred_check_branch
          %478 = sbr.rel (%p476) target = $region74
        $region73: #{linear_forward.1} parent=65 // pred_region
          %479 = vst [vmem:[%s457] sm:$0xff] 0.0
          %480 = vst [vmem:[%s457 + $0x8] sm:$0xff] 0.0
          %481 = vst [vmem:[%s457 + $0x10] sm:$0xff] 0.0
        $region74: #{linear_forward.1} parent=65 // pred_fallthru
          _
        %v482 = vld [vmem:[%s457] sm:$0xff]
        %v483 = vld [vmem:[%s457 + $0x8] sm:$0xff]
        %v484 = vld [vmem:[%s457 + $0x10] sm:$0xff]
        %v485 = vld [vmem:[%s467] sm:$0xff]
        %v486 = vld [vmem:[%s467 + $0x8] sm:$0xff]
        %v487 = vld [vmem:[%s467 + $0x10] sm:$0xff]
        %v488 = vld [vmem:[%s467 + $0x18] sm:$0xff]
        %v489 = vld [vmem:[%s467 + $0x20] sm:$0xff]
        %v490 = vld [vmem:[%s467 + $0x28] sm:$0xff]
        %v491 = vld [vmem:[%s467 + $0x30] sm:$0xff]
        %v492 = vld [vmem:[%s467 + $0x38] sm:$0xff]
        %v493 = vld [vmem:[%s467 + $0x40] sm:$0xff]
        %v494 = vld [vmem:[%s424] sm:$0xff]
        %v495 = vld [vmem:[%s424 + $0x8] sm:$0xff]
        %v496 = vld [vmem:[%s424 + $0x10] sm:$0xff]
        %v497 = vld [vmem:[%s424 + $0x18] sm:$0xff]
        %v498 = vld [vmem:[%s424 + $0x20] sm:$0xff]
        %v499 = vld [vmem:[%s424 + $0x28] sm:$0xff]
        %v500 = vld [vmem:[%s424 + $0x30] sm:$0xff]
        %v501 = vld [vmem:[%s424 + $0x38] sm:$0xff]
        %v502 = vld [vmem:[%s424 + $0x40] sm:$0xff]
        %v503 = vld [vmem:[%s424 + $0x48] sm:$0xff]
        %v504 = vld [vmem:[%s424 + $0x50] sm:$0xff]
        %v505 = vld [vmem:[%s424 + $0x58] sm:$0xff]
        %v506 = vld [vmem:[%s424 + $0x60] sm:$0xff]
        %v507 = vld [vmem:[%s424 + $0x68] sm:$0xff]
        %v508 = vld [vmem:[%s424 + $0x70] sm:$0xff]
        %v509 = vld [vmem:[%s424 + $0x78] sm:$0xff]
        %v510 = vld [vmem:[%s424 + $0x80] sm:$0xff]
        %v511 = vld [vmem:[%s424 + $0x88] sm:$0xff]
        %v512 = vld [vmem:[%s424 + $0x90] sm:$0xff]
        %v513 = vld [vmem:[%s424 + $0x98] sm:$0xff]
        %v514 = vld [vmem:[%s424 + $0xa0] sm:$0xff]
        %v515 = vld [vmem:[%s424 + $0xa8] sm:$0xff]
        %v516 = vld [vmem:[%s424 + $0xb0] sm:$0xff]
        %v517 = vld [vmem:[%s424 + $0xb8] sm:$0xff]
        %v518 = vld [vmem:[%s424 + $0xc0] sm:$0xff]
        %v519 = vld [vmem:[%s424 + $0xc8] sm:$0xff]
        %v520 = vld [vmem:[%s424 + $0xd0] sm:$0xff]
        %v521 = vld [vmem:[%s424 + $0xd8] sm:$0xff]
        %v522 = vld [vmem:[%s424 + $0xe0] sm:$0xff]
        %v523 = vld [vmem:[%s424 + $0xe8] sm:$0xff]
        %v524 = vld [vmem:[%s424 + $0xf0] sm:$0xff]
        %v525 = vld [vmem:[%s424 + $0xf8] sm:$0xff]
        %v526 = vld [vmem:[%s424 + $0x100] sm:$0xff]
        %v527 = vld [vmem:[%s424 + $0x108] sm:$0xff]
        %v528 = vld [vmem:[%s424 + $0x110] sm:$0xff]
        %v529 = vld [vmem:[%s424 + $0x118] sm:$0xff]
        %v530 = vld [vmem:[%s424 + $0x120] sm:$0xff]
        %v531 = vld [vmem:[%s424 + $0x128] sm:$0xff]
        %v532 = vld [vmem:[%s424 + $0x130] sm:$0xff]
        %v533 = vld [vmem:[%s424 + $0x138] sm:$0xff]
        %v534 = vld [vmem:[%s424 + $0x140] sm:$0xff]
        %v535 = vld [vmem:[%s424 + $0x148] sm:$0xff]
        %v536 = vld [vmem:[%s424 + $0x150] sm:$0xff]
        %v537 = vld [vmem:[%s424 + $0x158] sm:$0xff]
        %v538 = vld [vmem:[%s424 + $0x160] sm:$0xff]
        %v539 = vld [vmem:[%s424 + $0x168] sm:$0xff]
        %v540 = vld [vmem:[%s424 + $0x170] sm:$0xff]
        %v541 = vld [vmem:[%s424 + $0x178] sm:$0xff]
        %542 = vmatpush.msra.mxu0 %v509
        %543 = vmatpush.msra.mxu0 %v508
        %544 = vmatpush.msra.mxu0 %v507
        %545 = vmatpush.msra.mxu0 %v506
        %546 = vmatpush.msra.mxu0 %v505
        %547 = vmatpush.msra.mxu0 %v504
        %548 = vmatpush.msra.mxu0 %v503
        %549 = vmatpush.msra.mxu0 %v502
        %550 = vmatpush.msra.mxu0 %v501
        %551 = vmatpush.msra.mxu0 %v500
        %552 = vmatpush.msra.mxu0 %v499
        %553 = vmatpush.msra.mxu0 %v498
        %554 = vmatpush.msra.mxu0 %v497
        %555 = vmatpush.msra.mxu0 %v496
        %556 = vmatpush.msra.mxu0 %v495
        %557 = vmatpush.msra.mxu0 %v494
        %558 = vmatmul.f32.gmra.mxu0 %v485
        %v559 = vpop.f32.mrf.mxu0
        %v560 = vadd.f32 0.0, %v559
        %561 = vmatmul.f32.gmra.mxu0 %v488
        %v562 = vpop.f32.mrf.mxu0
        %v563 = vadd.f32 0.0, %v562
        %564 = vmatmul.f32.gmra.mxu0 %v491
        %v565 = vpop.f32.mrf.mxu0
        %v566 = vadd.f32 0.0, %v565
        %567 = vdwg.mxu0
        %568 = vmatpush.msra.mxu0 %v525
        %569 = vmatpush.msra.mxu0 %v524
        %570 = vmatpush.msra.mxu0 %v523
        %571 = vmatpush.msra.mxu0 %v522
        %572 = vmatpush.msra.mxu0 %v521
        %573 = vmatpush.msra.mxu0 %v520
        %574 = vmatpush.msra.mxu0 %v519
        %575 = vmatpush.msra.mxu0 %v518
        %576 = vmatpush.msra.mxu0 %v517
        %577 = vmatpush.msra.mxu0 %v516
        %578 = vmatpush.msra.mxu0 %v515
        %579 = vmatpush.msra.mxu0 %v514
        %580 = vmatpush.msra.mxu0 %v513
        %581 = vmatpush.msra.mxu0 %v512
        %582 = vmatpush.msra.mxu0 %v511
        %583 = vmatpush.msra.mxu0 %v510
        %584 = vmatmul.f32.gmra.mxu0 %v486
        %v585 = vpop.f32.mrf.mxu0
        %v586 = vadd.f32 %v560, %v585
        %587 = vmatmul.f32.gmra.mxu0 %v489
        %v588 = vpop.f32.mrf.mxu0
        %v589 = vadd.f32 %v563, %v588
        %590 = vmatmul.f32.gmra.mxu0 %v492
        %v591 = vpop.f32.mrf.mxu0
        %v592 = vadd.f32 %v566, %v591
        %593 = vdwg.mxu0
        %594 = vmatpush.msra.mxu0 %v541
        %595 = vmatpush.msra.mxu0 %v540
        %596 = vmatpush.msra.mxu0 %v539
        %597 = vmatpush.msra.mxu0 %v538
        %598 = vmatpush.msra.mxu0 %v537
        %599 = vmatpush.msra.mxu0 %v536
        %600 = vmatpush.msra.mxu0 %v535
        %601 = vmatpush.msra.mxu0 %v534
        %602 = vmatpush.msra.mxu0 %v533
        %603 = vmatpush.msra.mxu0 %v532
        %604 = vmatpush.msra.mxu0 %v531
        %605 = vmatpush.msra.mxu0 %v530
        %606 = vmatpush.msra.mxu0 %v529
        %607 = vmatpush.msra.mxu0 %v528
        %608 = vmatpush.msra.mxu0 %v527
        %609 = vmatpush.msra.mxu0 %v526
        %610 = vmatmul.f32.gmra.mxu0 %v487
        %v611 = vpop.f32.mrf.mxu0
        %v612 = vadd.f32 %v586, %v611
        %613 = vmatmul.f32.gmra.mxu0 %v490
        %v614 = vpop.f32.mrf.mxu0
        %v615 = vadd.f32 %v589, %v614
        %616 = vmatmul.f32.gmra.mxu0 %v493
        %v617 = vpop.f32.mrf.mxu0
        %v618 = vadd.f32 %v592, %v617
        %619 = vdwg.mxu0
        %v620 = vadd.f32 %v482, %v612
        %v621 = vadd.f32 %v483, %v615
        %v622 = vadd.f32 %v484, %v618
        %623 = vst [vmem:[%s457] sm:$0xff] %v620
        %624 = vst [vmem:[%s457 + $0x8] sm:$0xff] %v621
        %625 = vst [vmem:[%s457 + $0x10] sm:$0xff] %v622
        // Predicated region
        $region75: #{linear_forward.1} parent=65 // pred_check
          %p626 = pneg %p475
        $region76: #{linear_forward.1} parent=65 // pred_check_branch
          %628 = sbr.rel (%p626) target = $region78
        $region77: #{linear_forward.1} parent=65 // pred_region
          %v629 = vld [vmem:[%s457] sm:$0xff]
          %v630 = vld [vmem:[%s457 + $0x8] sm:$0xff]
          %v631 = vld [vmem:[%s457 + $0x10] sm:$0xff]
          %v632 = vld [vmem:[%s473] sm:$0x1]
          %v634 = vperm.slane %v632, 0
          %v636 = vadd.f32 %v629, %v634
          %v637 = vadd.f32 %v630, %v634
          %v638 = vadd.f32 %v631, %v634
          %639 = vst [vmem:[%s457] sm:$0xff] %v636
          %640 = vst [vmem:[%s457 + $0x8] sm:$0xff] %v637
          %641 = vst [vmem:[%s457 + $0x10] sm:$0xff] %v638
        $region78: #{linear_forward.1} parent=65 // pred_fallthru
          _
        %s642 = sand.u32 %s128, 1
        %s643 = scalar_lea.sflag [#allocation4], %s642
        %s644 = sand.u32 %s128, 1
        %s645 = smul.addr %s644, 24
        %s646 = scalar_lea.vmem [#allocation3], %s645
        // Predicated region
        $region79: #{linear_forward.1} parent=65 // pred_check
          %p647 = pneg %p138
        $region80: #{linear_forward.1} parent=65 // pred_check_branch
          %649 = sbr.rel (%p647) target = $region82
        $region81: #{linear_forward.1} parent=65 // pred_region
          %s650 = smul.u32 3, %s22
          %652 = vsyncadd %s643, 0
          %s653 = smul.addr %s650, 2
          %s654 = sadd.s32 %s23, %s653
          %s655 = smul.addr %s654, 8
          %s656 = scalar_lea.hbm %s3, %s655
          %s657 = sshll.u32 %s646, 4
          %s658 = int_to_ptr.vmem [resolvable:$true] %s657
          %s659 = sshll.u32 %s656, 4
          %s660 = int_to_ptr.hbm [resolvable:$true] %s659
          %665 = dma.vmem_to_hbm [thread:$0]  %s658, 384, %s660, %s643, 128, 256, 8
        $region82: #{linear_forward.1} parent=65 // pred_fallthru
          _
      $region66: #{linear_forward.1} parent=5 // pred_fallthru
        _
      %p666 = scmp.le.s32.totalorder 2, %s12
      // Predicated region
      $region83: #{linear_forward.1} parent=5 // pred_check
        %p667 = pneg %p666
      $region84: #{linear_forward.1} parent=5 // pred_check_branch
        %669 = sbr.rel (%p667) target = $region86
      $region85: #{linear_forward.1} parent=5 // pred_region
        %s670 = ssub.s32 %s12, 2
        // Predicated region
        $region87: #{linear_forward.1} parent=85 // pred_check
          %p671 = pneg %p144
        $region88: #{linear_forward.1} parent=85 // pred_check_branch
          %673 = sbr.rel (%p671) target = $region90
        $region89: #{linear_forward.1} parent=85 // pred_region
          %s674 = sand.u32 %s129, 1
          %s675 = scalar_lea.sflag [#allocation4], %s674
          %s676 = sand.u32 %s129, 1
          %s677 = smul.addr %s676, 24
          %s678 = scalar_lea.vmem [#allocation3], %s677
          %680 = dma.done %s675, 384
        $region90: #{linear_forward.1} parent=85 // pred_fallthru
          _
      $region86: #{linear_forward.1} parent=5 // pred_fallthru
        _
    $region6: #{linear_forward.1} parent=1 // loop_footer
      %s16 = sadd.s32 1, %s12
    $region7: #{linear_forward.1} parent=1 // loop_footer_branch
      %11 = sbr.rel target = $region3
    $region8: #{linear_forward.1} parent=1 // loop_exit
      _
    %681 = vsyncpa [#allocation4], 1
    %s682 = scalar_lea.sflag [#allocation4], 1
    %683 = vsyncpa %s682, 1

</llo_original>
